<compile_context>
chip_gen: v7x
topology: tpu7x:2x2x1
jax: 0.10.0
libtpu: 0.0.40
codegen_flags: <defaults>
</compile_context>

<pallas_src>
import functools

import jax
import jax.numpy as jnp
from jax.experimental import pallas as pl
from jax.experimental.pallas import tpu as pltpu


LANE = 128      # lane width: last dims padded to multiples of this
SUBLANE = 8     # f32 sublane multiple for the batch tile


def _round_up(x, m):
    return (x + m - 1) // m * m


def _apply_activation(acc, activation):
    if activation is None:
        return acc
    if activation == "relu":
        return jnp.maximum(acc, 0.0)
    if activation == "sigmoid":
        return jax.nn.sigmoid(acc)        # EUP path
    if activation == "tanh":
        return jnp.tanh(acc)              # EUP path
    if activation == "leaky_relu":
        return jnp.where(acc >= 0.0, acc, 0.01 * acc)
    raise NotImplementedError("activation function not supported")


def _fused_mlp_kernel(*refs, num_layer, activation, compute_dtype):
    """refs = (x_ref, w0, b0, w1, b1, ..., w_{L-1}, b_{L-1}, o_ref)."""
    x_ref = refs[0]
    o_ref = refs[1 + 2 * num_layer]

    # Hidden state lives on-chip for the whole layer stack (never hits HBM).
    h = x_ref[...].astype(compute_dtype)
    for layer in range(num_layer):
        w_ref = refs[1 + 2 * layer]
        b_ref = refs[2 + 2 * layer]
        # MXU matmul in compute_dtype (bf16 by default), f32 accumulation.
        acc = jnp.dot(h, w_ref[...].astype(compute_dtype),
                      preferred_element_type=jnp.float32)
        acc = acc + b_ref[...]            # (1, Dout_p) broadcasts over the batch tile
        if layer < num_layer - 1:
            acc = _apply_activation(acc, activation)
            h = acc.astype(compute_dtype)
        else:
            # Final layer: no activation (matches MLP.forward).
            o_ref[...] = acc.astype(o_ref.dtype)


def mlp_forward(params, x, activation="relu", compute_dtype=jnp.bfloat16,
                batch_tile=128):
    """Fused MLP forward. params: list of (w [Din, Dout], b [Dout]); x: [B, Din]."""
    num_layer = len(params)
    B, Din = x.shape
    Dout = params[-1][0].shape[1]

    # ---- Pad shapes to TPU-friendly tiles -------------------------------------
    Din_p = _round_up(Din, LANE)
    Dout_p = _round_up(Dout, LANE)
    TM = min(batch_tile, _round_up(B, SUBLANE))
    B_p = _round_up(B, TM)

    x_p = jnp.zeros((B_p, Din_p), x.dtype).at[:B, :Din].set(x)

    # Zero-pad weights/biases to 128-multiples. Zero padding is exact: padded
    # hidden columns always meet zero weight rows in the next layer, so even
    # sigmoid (act(0)=0.5) on padded lanes contributes nothing downstream.
    padded = []
    in_dim_p = Din_p
    for (w, b) in params:
        fi, fo = w.shape
        fo_p = _round_up(fo, LANE)
        w_p = (jnp.zeros((in_dim_p, fo_p), compute_dtype)
               .at[:fi, :fo].set(w.astype(compute_dtype)))
        b_p = (jnp.zeros((1, fo_p), jnp.float32)
               .at[0, :fo].set(b.astype(jnp.float32)))
        padded.append((w_p, b_p))
        in_dim_p = fo_p

    # ---- VMEM budget for the resident-weight plan (sized for v7x's 64 MiB) ----
    resident_bytes = sum(w_p.size * w_p.dtype.itemsize + b_p.size * b_p.dtype.itemsize
                         for (w_p, b_p) in padded)
    max_width = max([Din_p] + [w_p.shape[1] for (w_p, _) in padded])
    io_bytes = 2 * TM * (Din_p + Dout_p) * x.dtype.itemsize   # double-buffered x/out tiles
    tmp_bytes = 2 * TM * max_width * 4                        # f32 intermediates headroom
    vmem_needed = resident_bytes + io_bytes + tmp_bytes
    if vmem_needed > 48 * 1024 * 1024:
        # TODO(synk): stream weights from HBM with K/N-tiled per-layer matmuls when
        # the fused resident-weight footprint exceeds ~48 MiB (v7x VMEM is 64 MiB).
        raise ValueError("fused MLP weight footprint too large for VMEM-resident plan")

    # ---- Cost estimate ---------------------------------------------------------
    flops = 0
    d_prev = Din_p
    for (w_p, _) in padded:
        flops += 2 * B_p * d_prev * w_p.shape[1]
        d_prev = w_p.shape[1]
    transcendentals = 0
    if activation in ("sigmoid", "tanh"):
        transcendentals = B_p * sum(w_p.shape[1] for (w_p, _) in padded[:-1])
    bytes_accessed = (x_p.size * x_p.dtype.itemsize
                      + B_p * Dout_p * x.dtype.itemsize
                      + resident_bytes)

    # ---- Specs: grid over batch tiles only; weights resident across the grid ---
    grid = (B_p // TM,)
    in_specs = [pl.BlockSpec((TM, Din_p), lambda i: (i, 0))]
    flat_inputs = [x_p]
    for (w_p, b_p) in padded:
        in_specs.append(pl.BlockSpec(w_p.shape, lambda i: (0, 0)))
        in_specs.append(pl.BlockSpec(b_p.shape, lambda i: (0, 0)))
        flat_inputs.append(w_p)
        flat_inputs.append(b_p)
    out_specs = pl.BlockSpec((TM, Dout_p), lambda i: (i, 0))

    kernel = functools.partial(_fused_mlp_kernel, num_layer=num_layer,
                               activation=activation, compute_dtype=compute_dtype)

    out_p = pl.pallas_call(
        kernel,
        out_shape=jax.ShapeDtypeStruct((B_p, Dout_p), x.dtype),
        grid=grid,
        in_specs=in_specs,
        out_specs=out_specs,
        compiler_params=pltpu.CompilerParams(
            dimension_semantics=("parallel",),
            vmem_limit_bytes=max(32 * 1024 * 1024,
                                 min(int(1.25 * vmem_needed), 96 * 1024 * 1024)),
        ),
        cost_estimate=pl.CostEstimate(flops=flops,
                                      transcendentals=transcendentals,
                                      bytes_accessed=bytes_accessed),
    )(*flat_inputs)

    return out_p[:B, :Dout]


def init_mlp_params(key, input_size, hidden_size, output_size, num_layer=3,
                    dtype=jnp.float32):
    """Deterministic init mimicking nn.Linear (uniform(-1/sqrt(fan_in), +1/sqrt(fan_in)))."""
    assert num_layer >= 1
    if num_layer == 1:
        dims = [(input_size, output_size)]
    else:
        dims = [(input_size, hidden_size)]
        dims += [(hidden_size, hidden_size)] * (num_layer - 2)
        dims += [(hidden_size, output_size)]
    params = []
    for (fan_in, fan_out) in dims:
        key, kw, kb = jax.random.split(key, 3)
        bound = 1.0 / jnp.sqrt(fan_in)
        # stored as [in, out] (transposed relative to PyTorch's [out, in])
        w = jax.random.uniform(kw, (fan_in, fan_out), dtype, -bound, bound)
        b = jax.random.uniform(kb, (fan_out,), dtype, -bound, bound)
        params.append((w, b))
    return params
    # NOTE: dropout_ratio in the PyTorch module is never applied in forward(), so
    # it is intentionally omitted here.


if __name__ == "__main__":
    key = jax.random.PRNGKey(0)
    batch, input_size, hidden_size, output_size = 8, 16, 32, 8
    kp, kx = jax.random.split(key)
    params = init_mlp_params(kp, input_size, hidden_size, output_size, num_layer=3)
    x = jax.random.normal(kx, (batch, input_size), jnp.float32)

    # Default (bf16 matmul, f32 accumulate) fused forward.
    fwd_bf16 = jax.jit(functools.partial(mlp_forward, activation="relu"))
    out = fwd_bf16(params, x)
    jax.block_until_ready(out)

    # Pure-JAX f32 reference.
    h = x
    for (w, b) in params[:-1]:
        h = jnp.maximum(h @ w + b, 0.0)
    ref = h @ params[-1][0] + params[-1][1]

    assert out.shape == (batch, output_size)
    # bf16 matmul path -> loosened tolerance.
    assert jnp.allclose(out, ref, atol=5e-2, rtol=5e-2), float(jnp.max(jnp.abs(out - ref)))

    # f32 compute path should match the reference tightly.
    fwd_f32 = jax.jit(functools.partial(mlp_forward, activation="relu",
                                        compute_dtype=jnp.float32))
    out_f32 = fwd_f32(params, x)
    jax.block_until_ready(out_f32)
    assert jnp.allclose(out_f32, ref, atol=1e-5, rtol=1e-5)

    print("KERNEL_OK")
</pallas_src>

<mosaic_0001>
module attributes {stable_mosaic.version = 11 : i64} {
  func.func @_fused_mlp_kernel(%arg0: i32, %arg1: memref<8x128xf32, #tpu.memory_space<vmem>>, %arg2: memref<128x128xbf16, #tpu.memory_space<vmem>>, %arg3: memref<1x128xf32, #tpu.memory_space<vmem>>, %arg4: memref<128x128xbf16, #tpu.memory_space<vmem>>, %arg5: memref<1x128xf32, #tpu.memory_space<vmem>>, %arg6: memref<128x128xbf16, #tpu.memory_space<vmem>>, %arg7: memref<1x128xf32, #tpu.memory_space<vmem>>, %arg8: memref<8x128xf32, #tpu.memory_space<vmem>>) attributes {dimension_semantics = [#tpu.dimension_semantics<parallel>], iteration_bounds = array<i64: 1>, scalar_prefetch = 0 : i64, scratch_operands = 0 : i64, tpu.core_type = #tpu.core_type<tc>, window_params = [{transform_indices = @transform_0, window_bounds = array<i64: 8, 128>}, {pipeline_mode = #tpu.pipeline_mode<synchronous>, transform_indices = @transform_1, window_bounds = array<i64: 128, 128>}, {pipeline_mode = #tpu.pipeline_mode<synchronous>, transform_indices = @transform_2, window_bounds = array<i64: 1, 128>}, {pipeline_mode = #tpu.pipeline_mode<synchronous>, transform_indices = @transform_3, window_bounds = array<i64: 128, 128>}, {pipeline_mode = #tpu.pipeline_mode<synchronous>, transform_indices = @transform_4, window_bounds = array<i64: 1, 128>}, {pipeline_mode = #tpu.pipeline_mode<synchronous>, transform_indices = @transform_5, window_bounds = array<i64: 128, 128>}, {pipeline_mode = #tpu.pipeline_mode<synchronous>, transform_indices = @transform_6, window_bounds = array<i64: 1, 128>}, {transform_indices = @transform_7, window_bounds = array<i64: 8, 128>}]} {
    %c0 = arith.constant 0 : index
    %c0_0 = arith.constant 0 : index
    %0 = vector.load %arg1[%c0, %c0_0] : memref<8x128xf32, #tpu.memory_space<vmem>>, vector<8x128xf32>
    %1 = arith.truncf %0 : vector<8x128xf32> to vector<8x128xbf16>
    %c0_1 = arith.constant 0 : index
    %c0_2 = arith.constant 0 : index
    %2 = vector.load %arg2[%c0_1, %c0_2] : memref<128x128xbf16, #tpu.memory_space<vmem>>, vector<128x128xbf16>
    %cst = arith.constant dense<0.000000e+00> : vector<8x128xf32>
    %3 = tpu.matmul %1, %2, %cst {dimension_numbers = #tpu.dot_dimension_numbers<[1], [0], [0], [1], [0, 0, 1, 1], [], []>} : vector<8x128xbf16>, vector<128x128xbf16>, vector<8x128xf32> -> vector<8x128xf32>
    %c0_3 = arith.constant 0 : index
    %c0_4 = arith.constant 0 : index
    %4 = vector.load %arg3[%c0_3, %c0_4] : memref<1x128xf32, #tpu.memory_space<vmem>>, vector<1x128xf32>
    %5 = vector.broadcast %4 : vector<1x128xf32> to vector<8x128xf32>
    %6 = arith.addf %3, %5 : vector<8x128xf32>
    %cst_5 = arith.constant 0.000000e+00 : f32
    %7 = vector.broadcast %cst_5 : f32 to vector<8x128xf32>
    %8 = arith.maximumf %6, %7 : vector<8x128xf32>
    %9 = arith.truncf %8 : vector<8x128xf32> to vector<8x128xbf16>
    %c0_6 = arith.constant 0 : index
    %c0_7 = arith.constant 0 : index
    %10 = vector.load %arg4[%c0_6, %c0_7] : memref<128x128xbf16, #tpu.memory_space<vmem>>, vector<128x128xbf16>
    %cst_8 = arith.constant dense<0.000000e+00> : vector<8x128xf32>
    %11 = tpu.matmul %9, %10, %cst_8 {dimension_numbers = #tpu.dot_dimension_numbers<[1], [0], [0], [1], [0, 0, 1, 1], [], []>} : vector<8x128xbf16>, vector<128x128xbf16>, vector<8x128xf32> -> vector<8x128xf32>
    %c0_9 = arith.constant 0 : index
    %c0_10 = arith.constant 0 : index
    %12 = vector.load %arg5[%c0_9, %c0_10] : memref<1x128xf32, #tpu.memory_space<vmem>>, vector<1x128xf32>
    %13 = vector.broadcast %12 : vector<1x128xf32> to vector<8x128xf32>
    %14 = arith.addf %11, %13 : vector<8x128xf32>
    %cst_11 = arith.constant 0.000000e+00 : f32
    %15 = vector.broadcast %cst_11 : f32 to vector<8x128xf32>
    %16 = arith.maximumf %14, %15 : vector<8x128xf32>
    %17 = arith.truncf %16 : vector<8x128xf32> to vector<8x128xbf16>
    %c0_12 = arith.constant 0 : index
    %c0_13 = arith.constant 0 : index
    %18 = vector.load %arg6[%c0_12, %c0_13] : memref<128x128xbf16, #tpu.memory_space<vmem>>, vector<128x128xbf16>
    %cst_14 = arith.constant dense<0.000000e+00> : vector<8x128xf32>
    %19 = tpu.matmul %17, %18, %cst_14 {dimension_numbers = #tpu.dot_dimension_numbers<[1], [0], [0], [1], [0, 0, 1, 1], [], []>} : vector<8x128xbf16>, vector<128x128xbf16>, vector<8x128xf32> -> vector<8x128xf32>
    %c0_15 = arith.constant 0 : index
    %c0_16 = arith.constant 0 : index
    %20 = vector.load %arg7[%c0_15, %c0_16] : memref<1x128xf32, #tpu.memory_space<vmem>>, vector<1x128xf32>
    %21 = vector.broadcast %20 : vector<1x128xf32> to vector<8x128xf32>
    %22 = arith.addf %19, %21 : vector<8x128xf32>
    %c0_17 = arith.constant 0 : index
    %c0_18 = arith.constant 0 : index
    %23 = vector.load %arg8[%c0_17, %c0_18] : memref<8x128xf32, #tpu.memory_space<vmem>>, vector<8x128xf32>
    tpu.vector_store %arg8[%c0_17, %c0_18], %22 {strides = array<i32>} : memref<8x128xf32, #tpu.memory_space<vmem>>, vector<8x128xf32>,
    return
  }
  func.func @transform_0(%arg0: i32) -> (i32, i32) {
    %c0_i32 = arith.constant 0 : i32
    %c0_i32_0 = arith.constant 0 : i32
    return %arg0, %c0_i32 : i32, i32
  }
  func.func @transform_1(%arg0: i32) -> (i32, i32) {
    %c0_i32 = arith.constant 0 : i32
    %c0_i32_0 = arith.constant 0 : i32
    %c0_i32_1 = arith.constant 0 : i32
    return %c0_i32, %c0_i32_0 : i32, i32
  }
  func.func @transform_2(%arg0: i32) -> (i32, i32) {
    %c0_i32 = arith.constant 0 : i32
    %c0_i32_0 = arith.constant 0 : i32
    %c0_i32_1 = arith.constant 0 : i32
    return %c0_i32, %c0_i32_0 : i32, i32
  }
  func.func @transform_3(%arg0: i32) -> (i32, i32) {
    %c0_i32 = arith.constant 0 : i32
    %c0_i32_0 = arith.constant 0 : i32
    %c0_i32_1 = arith.constant 0 : i32
    return %c0_i32, %c0_i32_0 : i32, i32
  }
  func.func @transform_4(%arg0: i32) -> (i32, i32) {
    %c0_i32 = arith.constant 0 : i32
    %c0_i32_0 = arith.constant 0 : i32
    %c0_i32_1 = arith.constant 0 : i32
    return %c0_i32, %c0_i32_0 : i32, i32
  }
  func.func @transform_5(%arg0: i32) -> (i32, i32) {
    %c0_i32 = arith.constant 0 : i32
    %c0_i32_0 = arith.constant 0 : i32
    %c0_i32_1 = arith.constant 0 : i32
    return %c0_i32, %c0_i32_0 : i32, i32
  }
  func.func @transform_6(%arg0: i32) -> (i32, i32) {
    %c0_i32 = arith.constant 0 : i32
    %c0_i32_0 = arith.constant 0 : i32
    %c0_i32_1 = arith.constant 0 : i32
    return %c0_i32, %c0_i32_0 : i32, i32
  }
  func.func @transform_7(%arg0: i32) -> (i32, i32) {
    %c0_i32 = arith.constant 0 : i32
    %c0_i32_0 = arith.constant 0 : i32
    return %arg0, %c0_i32 : i32, i32
  }
}

</mosaic_0001>

<llo_original>
// kernel: mlp_forward.1
$region0: #{mlp_forward.1}
  #allocation0 [shape = 'u32[]', space=smem, size = 0x4, offset = 0x4, fixed_abs, tag = 'smem constant byte address 0x4 - core index']
  #allocation1 [shape = 'u32[144,128]{1,0:T(1,128)}', space=vmem, size = 0x12000, scoped, tag = 'internal scratch']
  %s0 = inlined_call_operand.vmem [shape: f32[8,128], index: 0, kind: input, shape index: {}]
  %s1 = inlined_call_operand.vmem [shape: bf16[128,128], index: 1, kind: input, shape index: {}]
  %s2 = inlined_call_operand.vmem [shape: f32[1,128], index: 2, kind: input, shape index: {}]
  %s3 = inlined_call_operand.vmem [shape: bf16[128,128], index: 3, kind: input, shape index: {}]
  %s4 = inlined_call_operand.vmem [shape: f32[1,128], index: 4, kind: input, shape index: {}]
  %s5 = inlined_call_operand.vmem [shape: bf16[128,128], index: 5, kind: input, shape index: {}]
  %s6 = inlined_call_operand.vmem [shape: f32[1,128], index: 6, kind: input, shape index: {}]
  %s7 = inlined_call_operand.hbm [shape: f32[8,128], index: 7, kind: output, shape index: {}]
  %s8 = sld [smem:[#allocation0]]
  $region38: #{mlp_forward.1} parent=0
    _
  %s10 = ssub.s32 1, %s8
  %s11 = scalar_select 0, %s10, %s8
  $region1: #{mlp_forward.1} parent=0
    #allocation2 [shape = 'u8[4096]{0}', space=vmem, size = 0x1000, scoped, tag = 'output window, operand 0, single buffered']
    #allocation3 [shape = 's32[1]{0}', space=sflag, size = 0x4, scoped, tag = 'scoped memory for mlp_forward.1']
    %12 = vsyncpa [#allocation3], 0
    // Predicated region
    $region2: #{mlp_forward.1} parent=1 // pred_check
      _
    $region3: #{mlp_forward.1} parent=1 // pred_check_branch
      %14 = sbr.rel (0) target = $region5
    $region4: #{mlp_forward.1} parent=1 // pred_region
      _
    $region5: #{mlp_forward.1} parent=1 // pred_fallthru
      _
    // Predicated region
    $region6: #{mlp_forward.1} parent=1 // pred_check
      _
    $region7: #{mlp_forward.1} parent=1 // pred_check_branch
      %16 = sbr.rel (0) target = $region9
    $region8: #{mlp_forward.1} parent=1 // pred_region
      _
    $region9: #{mlp_forward.1} parent=1 // pred_fallthru
      _
    // Predicated region
    $region10: #{mlp_forward.1} parent=1 // pred_check
      _
    $region11: #{mlp_forward.1} parent=1 // pred_check_branch
      %18 = sbr.rel (0) target = $region13
    $region12: #{mlp_forward.1} parent=1 // pred_region
      _
    $region13: #{mlp_forward.1} parent=1 // pred_fallthru
      _
    // Predicated region
    $region14: #{mlp_forward.1} parent=1 // pred_check
      _
    $region15: #{mlp_forward.1} parent=1 // pred_check_branch
      %20 = sbr.rel (0) target = $region17
    $region16: #{mlp_forward.1} parent=1 // pred_region
      _
    $region17: #{mlp_forward.1} parent=1 // pred_fallthru
      _
    // Predicated region
    $region18: #{mlp_forward.1} parent=1 // pred_check
      _
    $region19: #{mlp_forward.1} parent=1 // pred_check_branch
      %22 = sbr.rel (0) target = $region21
    $region20: #{mlp_forward.1} parent=1 // pred_region
      _
    $region21: #{mlp_forward.1} parent=1 // pred_fallthru
      _
    // Predicated region
    $region22: #{mlp_forward.1} parent=1 // pred_check
      _
    $region23: #{mlp_forward.1} parent=1 // pred_check_branch
      %24 = sbr.rel (0) target = $region25
    $region24: #{mlp_forward.1} parent=1 // pred_region
      _
    $region25: #{mlp_forward.1} parent=1 // pred_fallthru
      _
    // Predicated region
    $region26: #{mlp_forward.1} parent=1 // pred_check
      _
    $region27: #{mlp_forward.1} parent=1 // pred_check_branch
      %26 = sbr.rel (0) target = $region29
    $region28: #{mlp_forward.1} parent=1 // pred_region
      _
    $region29: #{mlp_forward.1} parent=1 // pred_fallthru
      _
    %v28 = vld [vmem:[%s0] sm:$0xff]
    %v29 = vpack.c.bf16 %v28, %v28
    %v30 = vld [vmem:[%s1] sm:$0xf]
    %v31 = vld [vmem:[%s1 + $0x4] sm:$0xf]
    %v32 = vld [vmem:[%s1 + $0x8] sm:$0xf]
    %v33 = vld [vmem:[%s1 + $0xc] sm:$0xf]
    %v34 = vld [vmem:[%s1 + $0x10] sm:$0xf]
    %v35 = vld [vmem:[%s1 + $0x14] sm:$0xf]
    %v36 = vld [vmem:[%s1 + $0x18] sm:$0xf]
    %v37 = vld [vmem:[%s1 + $0x1c] sm:$0xf]
    %v38 = vld [vmem:[%s1 + $0x20] sm:$0xf]
    %v39 = vld [vmem:[%s1 + $0x24] sm:$0xf]
    %v40 = vld [vmem:[%s1 + $0x28] sm:$0xf]
    %v41 = vld [vmem:[%s1 + $0x2c] sm:$0xf]
    %v42 = vld [vmem:[%s1 + $0x30] sm:$0xf]
    %v43 = vld [vmem:[%s1 + $0x34] sm:$0xf]
    %v44 = vld [vmem:[%s1 + $0x38] sm:$0xf]
    %v45 = vld [vmem:[%s1 + $0x3c] sm:$0xf]
    %v46 = vld [vmem:[%s2] sm:$0x1]
    %v48 = vlaneseq
    %v49 = vshrl.u32 %v48, 7
    %v50 = vsub.s32 0, %v49
    %v51 = vrot.slane %v46, %v50
    %v69 = vunpack.c.l.b16 %v30
    %v70 = vunpack.c.l.b16 %v31
    %v71 = vunpack.c.l.b16 %v32
    %v72 = vunpack.c.l.b16 %v33
    %v73 = vunpack.c.l.b16 %v34
    %v74 = vunpack.c.l.b16 %v35
    %v75 = vunpack.c.l.b16 %v36
    %v76 = vunpack.c.l.b16 %v37
    %v77 = vunpack.c.l.b16 %v38
    %v78 = vunpack.c.l.b16 %v39
    %v79 = vunpack.c.l.b16 %v40
    %v80 = vunpack.c.l.b16 %v41
    %v81 = vunpack.c.l.b16 %v42
    %v82 = vunpack.c.l.b16 %v43
    %v83 = vunpack.c.l.b16 %v44
    %v84 = vunpack.c.l.b16 %v45
    %v85 = vpack.c.b16 %v70, %v69
    %v86 = vpack.c.b16 %v72, %v71
    %v87 = vpack.c.b16 %v74, %v73
    %v88 = vpack.c.b16 %v76, %v75
    %v89 = vpack.c.b16 %v78, %v77
    %v90 = vpack.c.b16 %v80, %v79
    %v91 = vpack.c.b16 %v82, %v81
    %v92 = vpack.c.b16 %v84, %v83
    %101 = vmatprep.subr.bf16.mxu0 0
    %102 = vmatpush1.bf16.msra.mxu0 %v85
    %103 = vmatprep.subr.bf16.mxu0 0
    %104 = vmatpush1.bf16.msra.mxu0 %v86
    %105 = vmatprep.subr.bf16.mxu0 0
    %106 = vmatpush1.bf16.msra.mxu0 %v87
    %107 = vmatprep.subr.bf16.mxu0 0
    %108 = vmatpush1.bf16.msra.mxu0 %v88
    %109 = vmatprep.subr.bf16.mxu0 0
    %110 = vmatpush1.bf16.msra.mxu0 %v89
    %111 = vmatprep.subr.bf16.mxu0 0
    %112 = vmatpush1.bf16.msra.mxu0 %v90
    %113 = vmatprep.subr.bf16.mxu0 0
    %114 = vmatpush1.bf16.msra.mxu0 %v91
    %115 = vmatprep.subr.bf16.mxu0 0
    %116 = vmatpush1.bf16.msra.mxu0 %v92
    %117 = vmatprep.subr.bf16.mxu0 0
    %118 = vmatpush1.bf16.msra.mxu0 0
    %119 = vmatprep.subr.bf16.mxu0 0
    %120 = vmatpush1.bf16.msra.mxu0 0
    %121 = vmatprep.subr.bf16.mxu0 0
    %122 = vmatpush1.bf16.msra.mxu0 0
    %123 = vmatprep.subr.bf16.mxu0 0
    %124 = vmatpush1.bf16.msra.mxu0 0
    %125 = vmatprep.subr.bf16.mxu0 0
    %126 = vmatpush1.bf16.msra.mxu0 0
    %127 = vmatprep.subr.bf16.mxu0 0
    %128 = vmatpush1.bf16.msra.mxu0 0
    %129 = vmatprep.subr.bf16.mxu0 0
    %130 = vmatpush1.bf16.msra.mxu0 0
    %131 = vmatprep.subr.bf16.mxu0 0
    %132 = vmatpush1.bf16.msra.mxu0 0
    %133 = vmatprep.mubr.bf16.mxu0 0
    %134 = vmatmul.mubr.bf16.gmra.mrb[0].mxu0 %v29
    %v135 = vpop.f32.mrb[0].mxu0
    %v136 = vadd.f32 %v51, %v135
    %v137 = vpop.f32.mrb[0].mxu0
    %v138 = vpop.f32.mrb[0].mxu0
    %v139 = vpop.f32.mrb[0].mxu0
    %140 = vdwg.mxu0
    %v141 = vmax.f32 %v136, 0.0
    %v142 = vpack.c.bf16 %v141, %v141
    %v143 = vld [vmem:[%s3] sm:$0xf]
    %v144 = vld [vmem:[%s3 + $0x4] sm:$0xf]
    %v145 = vld [vmem:[%s3 + $0x8] sm:$0xf]
    %v146 = vld [vmem:[%s3 + $0xc] sm:$0xf]
    %v147 = vld [vmem:[%s3 + $0x10] sm:$0xf]
    %v148 = vld [vmem:[%s3 + $0x14] sm:$0xf]
    %v149 = vld [vmem:[%s3 + $0x18] sm:$0xf]
    %v150 = vld [vmem:[%s3 + $0x1c] sm:$0xf]
    %v151 = vld [vmem:[%s3 + $0x20] sm:$0xf]
    %v152 = vld [vmem:[%s3 + $0x24] sm:$0xf]
    %v153 = vld [vmem:[%s3 + $0x28] sm:$0xf]
    %v154 = vld [vmem:[%s3 + $0x2c] sm:$0xf]
    %v155 = vld [vmem:[%s3 + $0x30] sm:$0xf]
    %v156 = vld [vmem:[%s3 + $0x34] sm:$0xf]
    %v157 = vld [vmem:[%s3 + $0x38] sm:$0xf]
    %v158 = vld [vmem:[%s3 + $0x3c] sm:$0xf]
    %v159 = vld [vmem:[%s4] sm:$0x1]
    %v161 = vlaneseq
    %v162 = vshrl.u32 %v161, 7
    %v163 = vsub.s32 0, %v162
    %v164 = vrot.slane %v159, %v163
    %v182 = vunpack.c.l.b16 %v143
    %v183 = vunpack.c.l.b16 %v144
    %v184 = vunpack.c.l.b16 %v145
    %v185 = vunpack.c.l.b16 %v146
    %v186 = vunpack.c.l.b16 %v147
    %v187 = vunpack.c.l.b16 %v148
    %v188 = vunpack.c.l.b16 %v149
    %v189 = vunpack.c.l.b16 %v150
    %v190 = vunpack.c.l.b16 %v151
    %v191 = vunpack.c.l.b16 %v152
    %v192 = vunpack.c.l.b16 %v153
    %v193 = vunpack.c.l.b16 %v154
    %v194 = vunpack.c.l.b16 %v155
    %v195 = vunpack.c.l.b16 %v156
    %v196 = vunpack.c.l.b16 %v157
    %v197 = vunpack.c.l.b16 %v158
    %v198 = vpack.c.b16 %v183, %v182
    %v199 = vpack.c.b16 %v185, %v184
    %v200 = vpack.c.b16 %v187, %v186
    %v201 = vpack.c.b16 %v189, %v188
    %v202 = vpack.c.b16 %v191, %v190
    %v203 = vpack.c.b16 %v193, %v192
    %v204 = vpack.c.b16 %v195, %v194
    %v205 = vpack.c.b16 %v197, %v196
    %214 = vmatprep.subr.bf16.mxu0 0
    %215 = vmatpush1.bf16.msra.mxu0 %v198
    %216 = vmatprep.subr.bf16.mxu0 0
    %217 = vmatpush1.bf16.msra.mxu0 %v199
    %218 = vmatprep.subr.bf16.mxu0 0
    %219 = vmatpush1.bf16.msra.mxu0 %v200
    %220 = vmatprep.subr.bf16.mxu0 0
    %221 = vmatpush1.bf16.msra.mxu0 %v201
    %222 = vmatprep.subr.bf16.mxu0 0
    %223 = vmatpush1.bf16.msra.mxu0 %v202
    %224 = vmatprep.subr.bf16.mxu0 0
    %225 = vmatpush1.bf16.msra.mxu0 %v203
    %226 = vmatprep.subr.bf16.mxu0 0
    %227 = vmatpush1.bf16.msra.mxu0 %v204
    %228 = vmatprep.subr.bf16.mxu0 0
    %229 = vmatpush1.bf16.msra.mxu0 %v205
    %230 = vmatprep.subr.bf16.mxu0 0
    %231 = vmatpush1.bf16.msra.mxu0 0
    %232 = vmatprep.subr.bf16.mxu0 0
    %233 = vmatpush1.bf16.msra.mxu0 0
    %234 = vmatprep.subr.bf16.mxu0 0
    %235 = vmatpush1.bf16.msra.mxu0 0
    %236 = vmatprep.subr.bf16.mxu0 0
    %237 = vmatpush1.bf16.msra.mxu0 0
    %238 = vmatprep.subr.bf16.mxu0 0
    %239 = vmatpush1.bf16.msra.mxu0 0
    %240 = vmatprep.subr.bf16.mxu0 0
    %241 = vmatpush1.bf16.msra.mxu0 0
    %242 = vmatprep.subr.bf16.mxu0 0
    %243 = vmatpush1.bf16.msra.mxu0 0
    %244 = vmatprep.subr.bf16.mxu0 0
    %245 = vmatpush1.bf16.msra.mxu0 0
    %246 = vmatprep.mubr.bf16.mxu0 0
    %247 = vmatmul.mubr.bf16.gmra.mrb[0].mxu0 %v142
    %v248 = vpop.f32.mrb[0].mxu0
    %v249 = vadd.f32 %v164, %v248
    %v250 = vpop.f32.mrb[0].mxu0
    %v251 = vpop.f32.mrb[0].mxu0
    %v252 = vpop.f32.mrb[0].mxu0
    %253 = vdwg.mxu0
    %v254 = vmax.f32 %v249, 0.0
    %v255 = vpack.c.bf16 %v254, %v254
    %v256 = vld [vmem:[%s5] sm:$0xf]
    %v257 = vld [vmem:[%s5 + $0x4] sm:$0xf]
    %v258 = vld [vmem:[%s5 + $0x8] sm:$0xf]
    %v259 = vld [vmem:[%s5 + $0xc] sm:$0xf]
    %v260 = vld [vmem:[%s5 + $0x10] sm:$0xf]
    %v261 = vld [vmem:[%s5 + $0x14] sm:$0xf]
    %v262 = vld [vmem:[%s5 + $0x18] sm:$0xf]
    %v263 = vld [vmem:[%s5 + $0x1c] sm:$0xf]
    %v264 = vld [vmem:[%s5 + $0x20] sm:$0xf]
    %v265 = vld [vmem:[%s5 + $0x24] sm:$0xf]
    %v266 = vld [vmem:[%s5 + $0x28] sm:$0xf]
    %v267 = vld [vmem:[%s5 + $0x2c] sm:$0xf]
    %v268 = vld [vmem:[%s5 + $0x30] sm:$0xf]
    %v269 = vld [vmem:[%s5 + $0x34] sm:$0xf]
    %v270 = vld [vmem:[%s5 + $0x38] sm:$0xf]
    %v271 = vld [vmem:[%s5 + $0x3c] sm:$0xf]
    %v272 = vld [vmem:[%s6] sm:$0x1]
    %v274 = vlaneseq
    %v275 = vshrl.u32 %v274, 7
    %v276 = vsub.s32 0, %v275
    %v277 = vrot.slane %v272, %v276
    %v295 = vunpack.c.l.b16 %v256
    %v296 = vunpack.c.l.b16 %v257
    %v297 = vunpack.c.l.b16 %v258
    %v298 = vunpack.c.l.b16 %v259
    %v299 = vunpack.c.l.b16 %v260
    %v300 = vunpack.c.l.b16 %v261
    %v301 = vunpack.c.l.b16 %v262
    %v302 = vunpack.c.l.b16 %v263
    %v303 = vunpack.c.l.b16 %v264
    %v304 = vunpack.c.l.b16 %v265
    %v305 = vunpack.c.l.b16 %v266
    %v306 = vunpack.c.l.b16 %v267
    %v307 = vunpack.c.l.b16 %v268
    %v308 = vunpack.c.l.b16 %v269
    %v309 = vunpack.c.l.b16 %v270
    %v310 = vunpack.c.l.b16 %v271
    %v311 = vpack.c.b16 %v296, %v295
    %v312 = vpack.c.b16 %v298, %v297
    %v313 = vpack.c.b16 %v300, %v299
    %v314 = vpack.c.b16 %v302, %v301
    %v315 = vpack.c.b16 %v304, %v303
    %v316 = vpack.c.b16 %v306, %v305
    %v317 = vpack.c.b16 %v308, %v307
    %v318 = vpack.c.b16 %v310, %v309
    %327 = vmatprep.subr.bf16.mxu0 0
    %328 = vmatpush1.bf16.msra.mxu0 %v311
    %329 = vmatprep.subr.bf16.mxu0 0
    %330 = vmatpush1.bf16.msra.mxu0 %v312
    %331 = vmatprep.subr.bf16.mxu0 0
    %332 = vmatpush1.bf16.msra.mxu0 %v313
    %333 = vmatprep.subr.bf16.mxu0 0
    %334 = vmatpush1.bf16.msra.mxu0 %v314
    %335 = vmatprep.subr.bf16.mxu0 0
    %336 = vmatpush1.bf16.msra.mxu0 %v315
    %337 = vmatprep.subr.bf16.mxu0 0
    %338 = vmatpush1.bf16.msra.mxu0 %v316
    %339 = vmatprep.subr.bf16.mxu0 0
    %340 = vmatpush1.bf16.msra.mxu0 %v317
    %341 = vmatprep.subr.bf16.mxu0 0
    %342 = vmatpush1.bf16.msra.mxu0 %v318
    %343 = vmatprep.subr.bf16.mxu0 0
    %344 = vmatpush1.bf16.msra.mxu0 0
    %345 = vmatprep.subr.bf16.mxu0 0
    %346 = vmatpush1.bf16.msra.mxu0 0
    %347 = vmatprep.subr.bf16.mxu0 0
    %348 = vmatpush1.bf16.msra.mxu0 0
    %349 = vmatprep.subr.bf16.mxu0 0
    %350 = vmatpush1.bf16.msra.mxu0 0
    %351 = vmatprep.subr.bf16.mxu0 0
    %352 = vmatpush1.bf16.msra.mxu0 0
    %353 = vmatprep.subr.bf16.mxu0 0
    %354 = vmatpush1.bf16.msra.mxu0 0
    %355 = vmatprep.subr.bf16.mxu0 0
    %356 = vmatpush1.bf16.msra.mxu0 0
    %357 = vmatprep.subr.bf16.mxu0 0
    %358 = vmatpush1.bf16.msra.mxu0 0
    %359 = vmatprep.mubr.bf16.mxu0 0
    %360 = vmatmul.mubr.bf16.gmra.mrb[0].mxu0 %v255
    %v361 = vpop.f32.mrb[0].mxu0
    %v362 = vadd.f32 %v277, %v361
    %v363 = vpop.f32.mrb[0].mxu0
    %v364 = vpop.f32.mrb[0].mxu0
    %v365 = vpop.f32.mrb[0].mxu0
    %366 = vdwg.mxu0
    %367 = vst [vmem:[#allocation2] sm:$0xff] %v362
    // Predicated region
    $region30: #{mlp_forward.1} parent=1 // pred_check
      _
    $region31: #{mlp_forward.1} parent=1 // pred_check_branch
      %369 = sbr.rel (0) target = $region33
    $region32: #{mlp_forward.1} parent=1 // pred_region
      %s371 = ssub.s32 128, 128
      %372 = vsyncadd [#allocation3], %s371
      %s374 = sshll.u32 [#allocation2], 4
      %s375 = int_to_ptr.vmem [resolvable:$true] %s374
      %377 = dma.vmem_to_hbm [thread:$0]  %s375, 128, %s7, [#allocation3]
    $region33: #{mlp_forward.1} parent=1 // pred_fallthru
      _
    // Predicated region
    $region34: #{mlp_forward.1} parent=1 // pred_check
      _
    $region35: #{mlp_forward.1} parent=1 // pred_check_branch
      %379 = sbr.rel (0) target = $region37
    $region36: #{mlp_forward.1} parent=1 // pred_region
      %380 = dma.done [#allocation3], 128
    $region37: #{mlp_forward.1} parent=1 // pred_fallthru
      _
    %381 = vsyncpa [#allocation3], 1

</llo_original>
